<compile_context>
chip_gen: v7x
topology: tpu7x:2x2x1
jax: 0.10.0
libtpu: 0.0.40
codegen_flags: <defaults>
</compile_context>

<pallas_src>
import jax
import jax.numpy as jnp
from jax.experimental import pallas as pl
from jax.experimental.pallas import tpu as pltpu


def _progressive_dropout_kernel(ch_ref, cut_ref, x_ref, o_ref):
    # ch_ref, cut_ref: VMEM (Rt, 1) int32 — per-row channel index / cutoff.
    # x_ref, o_ref:    VMEM (Rt, Lt) blocks of the (B*C, H*W) view.
    keep = ch_ref[...] < cut_ref[...]                     # (Rt, 1) bool
    # keep channels [0, cut), zero channels [cut, C)  (matches mask[i, j:] = 0)
    o_ref[...] = jnp.where(keep, x_ref[...], jnp.zeros_like(x_ref[...]))


def _pick_tile(extent, candidates):
    """Largest candidate tile that evenly divides `extent`; else full extent.

    Full extent is always a legal block dim (block dim == array dim)."""
    for c in candidates:
        if c <= extent and extent % c == 0:
            return c
    return extent


@jax.jit
def _progressive_dropout_apply(x, cutoffs):
    """Apply the progressive-dropout mask given per-sample cutoffs (int32[B])."""
    B, C, H, W = x.shape
    R, L = B * C, H * W
    x2 = x.reshape(R, L)

    # Per-row (batch, channel) metadata: row r = b*C + c.
    row_channel = jnp.tile(jnp.arange(C, dtype=jnp.int32), B).reshape(R, 1)
    row_cut = jnp.repeat(cutoffs.astype(jnp.int32), C).reshape(R, 1)

    rt = _pick_tile(R, (64, 32, 16, 8))          # multiples of 8 (f32 sublanes)
    lt = _pick_tile(L, (1024, 512, 256, 128))    # lane-dense multiples of 128
    grid = (R // rt, L // lt)

    out2 = pl.pallas_call(
        _progressive_dropout_kernel,
        out_shape=jax.ShapeDtypeStruct((R, L), x.dtype),
        grid_spec=pl.GridSpec(
            grid=grid,
            in_specs=[
                pl.BlockSpec((rt, 1), lambda r, l: (r, 0)),
                pl.BlockSpec((rt, 1), lambda r, l: (r, 0)),
                pl.BlockSpec((rt, lt), lambda r, l: (r, l)),
            ],
            out_specs=pl.BlockSpec((rt, lt), lambda r, l: (r, l)),
        ),
        compiler_params=pltpu.CompilerParams(
            dimension_semantics=("parallel", "parallel"),
        ),
        cost_estimate=pl.CostEstimate(
            flops=2 * R * L,
            transcendentals=0,
            bytes_accessed=2 * x.size * x.dtype.itemsize,
        ),
    )(row_channel, row_cut, x2)
    return out2.reshape(B, C, H, W)


def progressive_dropout(x, key, *, training=True, train_only=True):
    """JAX/Pallas equivalent of ProgressiveDropout.forward.

    Always returns only the (possibly masked) activation, like the PyTorch
    module. `key` replaces np.random.choice; the original uses a uniform
    probability vector, so uniform randint over [1, C] is equivalent.
    No 1/keep-fraction rescaling is applied (matches the reference module).
    """
    if not training and train_only:
        return x
    B, C = x.shape[0], x.shape[1]
    cutoffs = jax.random.randint(key, (B,), minval=1, maxval=C + 1, dtype=jnp.int32)
    return _progressive_dropout_apply(x, cutoffs)


if __name__ == "__main__":
    key = jax.random.PRNGKey(0)
    kx, kcut = jax.random.split(key)

    # Small shape matching the module's expectations (NCHW).
    B, C, H, W = 2, 4, 16, 16
    x = jax.random.normal(kx, (B, C, H, W), dtype=jnp.float32)

    # Deterministic cutoffs for the correctness check.
    cutoffs = jax.random.randint(kcut, (B,), 1, C + 1, dtype=jnp.int32)
    out = jax.block_until_ready(_progressive_dropout_apply(x, cutoffs))

    ch = jnp.arange(C).reshape(1, C, 1, 1)
    ref = jnp.where(ch < cutoffs.reshape(B, 1, 1, 1), x, 0.0)
    assert jnp.allclose(out, ref), "mismatch vs reference"

    # Public API: training draws its own cutoffs; eval (train_only) is identity.
    out_train = jax.block_until_ready(progressive_dropout(x, kcut, training=True))
    assert out_train.shape == x.shape
    out_eval = progressive_dropout(x, kcut, training=False)
    assert jnp.allclose(out_eval, x)

    # Larger shape exercising multiple row/lane tiles and grid steps.
    B2, C2, H2, W2 = 8, 16, 64, 64
    x2 = jax.random.normal(kx, (B2, C2, H2, W2), dtype=jnp.float32)
    cut2 = jax.random.randint(kcut, (B2,), 1, C2 + 1, dtype=jnp.int32)
    out2 = jax.block_until_ready(_progressive_dropout_apply(x2, cut2))
    ch2 = jnp.arange(C2).reshape(1, C2, 1, 1)
    ref2 = jnp.where(ch2 < cut2.reshape(B2, 1, 1, 1), x2, 0.0)
    assert jnp.allclose(out2, ref2), "mismatch vs reference (tiled case)"

    print("KERNEL_OK")
</pallas_src>

<mosaic_0001>
module attributes {stable_mosaic.version = 11 : i64} {
  func.func @_progressive_dropout_kernel(%arg0: i32, %arg1: i32, %arg2: memref<8x1xi32, #tpu.memory_space<vmem>>, %arg3: memref<8x1xi32, #tpu.memory_space<vmem>>, %arg4: memref<8x256xf32, #tpu.memory_space<vmem>>, %arg5: memref<8x256xf32, #tpu.memory_space<vmem>>) attributes {dimension_semantics = [#tpu.dimension_semantics<parallel>, #tpu.dimension_semantics<parallel>], iteration_bounds = array<i64: 1, 1>, scalar_prefetch = 0 : i64, scratch_operands = 0 : i64, tpu.core_type = #tpu.core_type<tc>, window_params = [{transform_indices = @transform_0, window_bounds = array<i64: 8, 1>}, {transform_indices = @transform_1, window_bounds = array<i64: 8, 1>}, {transform_indices = @transform_2, window_bounds = array<i64: 8, 256>}, {transform_indices = @transform_3, window_bounds = array<i64: 8, 256>}]} {
    %c0 = arith.constant 0 : index
    %c0_0 = arith.constant 0 : index
    %0 = vector.load %arg2[%c0, %c0_0] : memref<8x1xi32, #tpu.memory_space<vmem>>, vector<8x1xi32>
    %c0_1 = arith.constant 0 : index
    %c0_2 = arith.constant 0 : index
    %1 = vector.load %arg3[%c0_1, %c0_2] : memref<8x1xi32, #tpu.memory_space<vmem>>, vector<8x1xi32>
    %2 = arith.cmpi slt, %0, %1 : vector<8x1xi32>
    %c0_3 = arith.constant 0 : index
    %c0_4 = arith.constant 0 : index
    %3 = vector.load %arg4[%c0_3, %c0_4] : memref<8x256xf32, #tpu.memory_space<vmem>>, vector<8x256xf32>
    %cst = arith.constant 0.000000e+00 : f32
    %4 = vector.broadcast %cst : f32 to vector<8x256xf32>
    %5 = vector.shape_cast %2 : vector<8x1xi1> to vector<8x1xi1>
    %6 = vector.broadcast %5 : vector<8x1xi1> to vector<8x256xi1>
    %7 = arith.select %6, %3, %4 : vector<8x256xi1>, vector<8x256xf32>
    %c0_5 = arith.constant 0 : index
    %c0_6 = arith.constant 0 : index
    %8 = vector.load %arg5[%c0_5, %c0_6] : memref<8x256xf32, #tpu.memory_space<vmem>>, vector<8x256xf32>
    tpu.vector_store %arg5[%c0_5, %c0_6], %7 {strides = array<i32>} : memref<8x256xf32, #tpu.memory_space<vmem>>, vector<8x256xf32>,
    return
  }
  func.func @transform_0(%arg0: i32, %arg1: i32) -> (i32, i32) {
    %c0_i32 = arith.constant 0 : i32
    %c0_i32_0 = arith.constant 0 : i32
    return %arg0, %c0_i32 : i32, i32
  }
  func.func @transform_1(%arg0: i32, %arg1: i32) -> (i32, i32) {
    %c0_i32 = arith.constant 0 : i32
    %c0_i32_0 = arith.constant 0 : i32
    return %arg0, %c0_i32 : i32, i32
  }
  func.func @transform_2(%arg0: i32, %arg1: i32) -> (i32, i32) {
    %c0_i32 = arith.constant 0 : i32
    return %arg0, %arg1 : i32, i32
  }
  func.func @transform_3(%arg0: i32, %arg1: i32) -> (i32, i32) {
    %c0_i32 = arith.constant 0 : i32
    return %arg0, %arg1 : i32, i32
  }
}

</mosaic_0001>

<llo_original>
// kernel: tile.0
$region0: #{tile.0}
  %s0 = inlined_call_operand.vmem [shape: s32[2,4], index: 0, kind: input, shape index: {}]
  %s1 = inlined_call_operand.vmem [shape: s32[8,1], index: 1, kind: output, shape index: {}]
  $region1: #{tile.0} parent=0
    #allocation0 [shape = 'u8[4096]{0}', space=vmem, size = 0x1000, scoped, tag = 'scoped mem for input reshape']
    %s3 = sshllo.u32 0, 2
    %v4 = vld [vmem:[%s0] sm:%s3]
    %5 = vst [vmem:[#allocation0] sm:%s3] %v4
    %v6 = vld [vmem:[#allocation0] sm:$0x3]
    %vm7 = vcmask 7168
    %8 = vst.msk [vmem:[%s1] ss:$4 sm:$0x3] %vm7, %v6
    %v9 = vld [vmem:[#allocation0] sm:$0x3]
    %10 = vrot.lane.b32.xlu0 %v9, 127
    %v11 = vpop.permute.xlu0 %10
    %vm12 = vcmask 7168
    %s13 = scalar_lea.vmem %s1, 1
    %14 = vst.msk [vmem:[%s13] ss:$4 sm:$0x3] %vm12, %v11
    %v15 = vld [vmem:[#allocation0] sm:$0x3]
    %16 = vrot.lane.b32.xlu0 %v15, 126
    %v17 = vpop.permute.xlu0 %16
    %vm18 = vcmask 7168
    %s19 = scalar_lea.vmem %s1, 2
    %20 = vst.msk [vmem:[%s19] ss:$4 sm:$0x3] %vm18, %v17
    %v21 = vld [vmem:[#allocation0] sm:$0x3]
    %22 = vrot.lane.b32.xlu0 %v21, 125
    %v23 = vpop.permute.xlu0 %22
    %vm24 = vcmask 7168
    %s25 = scalar_lea.vmem %s1, 3
    %26 = vst.msk [vmem:[%s25] ss:$4 sm:$0x3] %vm24, %v23

// kernel: _progressive_dropout_apply.1
$region0: #{_progressive_dropout_apply.1}
  #allocation0 [shape = 'u32[]', space=smem, size = 0x4, offset = 0x4, fixed_abs, tag = 'smem constant byte address 0x4 - core index']
  #allocation1 [shape = 'u32[144,128]{1,0:T(1,128)}', space=vmem, size = 0x12000, scoped, tag = 'internal scratch']
  %s0 = inlined_call_operand.vmem [shape: s32[8,1], index: 0, kind: input, shape index: {}]
  %s1 = inlined_call_operand.vmem [shape: s32[8,1], index: 1, kind: input, shape index: {}]
  %s2 = inlined_call_operand.vmem [shape: f32[8,256], index: 2, kind: input, shape index: {}]
  %s3 = inlined_call_operand.vmem [shape: f32[8,256], index: 3, kind: output, shape index: {}]
  %s4 = sld [smem:[#allocation0]]
  $region22: #{_progressive_dropout_apply.1} parent=0
    _
  %s6 = ssub.s32 1, %s4
  %s7 = scalar_select 0, %s6, %s4
  // Predicated region
  $region2: #{_progressive_dropout_apply.1} parent=0 // pred_check
    _
  $region3: #{_progressive_dropout_apply.1} parent=0 // pred_check_branch
    %9 = sbr.rel (0) target = $region5
  $region4: #{_progressive_dropout_apply.1} parent=0 // pred_region
    _
  $region5: #{_progressive_dropout_apply.1} parent=0 // pred_fallthru
    _
  // Predicated region
  $region6: #{_progressive_dropout_apply.1} parent=0 // pred_check
    _
  $region7: #{_progressive_dropout_apply.1} parent=0 // pred_check_branch
    %11 = sbr.rel (0) target = $region9
  $region8: #{_progressive_dropout_apply.1} parent=0 // pred_region
    _
  $region9: #{_progressive_dropout_apply.1} parent=0 // pred_fallthru
    _
  // Predicated region
  $region10: #{_progressive_dropout_apply.1} parent=0 // pred_check
    _
  $region11: #{_progressive_dropout_apply.1} parent=0 // pred_check_branch
    %13 = sbr.rel (0) target = $region13
  $region12: #{_progressive_dropout_apply.1} parent=0 // pred_region
    _
  $region13: #{_progressive_dropout_apply.1} parent=0 // pred_fallthru
    _
  %v14 = vld [vmem:[%s0] sm:$0xff]
  %v15 = vld [vmem:[%s1] sm:$0xff]
  %vm16 = vcmp.lt.s32.totalorder %v14, %v15
  %v17 = vld [vmem:[%s2] sm:$0xff]
  %v18 = vld [vmem:[%s2 + $0x8] sm:$0xff]
  %v19 = vsel %vm16, 1, 0
  %20 = vset.pattern.permute.xlu0 0
  %21 = vperm.xlu0 %20, %v19
  %v22 = vpop.permute.xlu0 %21
  %vm23 = vcmp.eq.s32.totalorder %v22, 1
  %v24 = vsel %vm23, %v17, 0.0
  %v25 = vsel %vm23, %v18, 0.0
  %26 = vst [vmem:[%s3] sm:$0xff] %v24
  %27 = vst [vmem:[%s3 + $0x8] sm:$0xff] %v25
  // Predicated region
  $region14: #{_progressive_dropout_apply.1} parent=0 // pred_check
    _
  $region15: #{_progressive_dropout_apply.1} parent=0 // pred_check_branch
    %29 = sbr.rel (0) target = $region17
  $region16: #{_progressive_dropout_apply.1} parent=0 // pred_region
    _
  $region17: #{_progressive_dropout_apply.1} parent=0 // pred_fallthru
    _
  // Predicated region
  $region18: #{_progressive_dropout_apply.1} parent=0 // pred_check
    _
  $region19: #{_progressive_dropout_apply.1} parent=0 // pred_check_branch
    %31 = sbr.rel (0) target = $region21
  $region20: #{_progressive_dropout_apply.1} parent=0 // pred_region
    _
  $region21: #{_progressive_dropout_apply.1} parent=0 // pred_fallthru
    _

</llo_original>
